<compile_context>
chip_gen: v7x
topology: tpu7x:2x2x1
jax: 0.10.0
libtpu: 0.0.40
codegen_flags: <defaults>
</compile_context>

<pallas_src>
import functools

import numpy as np

import jax
import jax.numpy as jnp
from jax import lax
from jax.experimental import pallas as pl
from jax.experimental.pallas import tpu as pltpu


# ----------------------------------------------------------------------------
# Constants (kernel specialized for 16x16 images)
# ----------------------------------------------------------------------------
H_IMG = 16
W_IMG = 16
W_SHIFT = 4                        # log2(W_IMG)
HW = H_IMG * W_IMG                 # 256 pixels per sample (lane axis)

C_IN = 4                           # real image channels
X_PAD = 8                          # x / fake channel pad at the HBM boundary
CH_MIN = 16                        # minimum in-kernel channel pad (bf16 tile)

# per-layer padded channel widths of the stand-in architecture
C_E1, C_E2, C_BT = 16, 32, 32
C_D2, C_D1 = 16, 16
C_OUT = 16                         # generator output channels padded (real=4)
C_C1, C_C2, C_C3 = 16, 32, 64
B_ROWS = 64                        # bias stack rows = max padded Cout

LRELU_SLOPE = 0.2
MAX_BATCH_PER_STEP = 8

TAPS = tuple((dy, dx) for dy in (-1, 0, 1) for dx in (-1, 0, 1))

# bias-column slots inside the stacked bias tensor
(B_ENC1, B_ENC2, B_BOTT, B_DEC2, B_DEC1, B_OUT, B_C1, B_C2, B_C3) = range(9)
NUM_B = 9


# ----------------------------------------------------------------------------
# Empirical probe for pltpu.roll's shift convention
# ----------------------------------------------------------------------------
_ROLL_SIGN_CACHE = None


def _roll_sign():
    """+1 if pltpu.roll follows jnp.roll's convention, else -1."""
    global _ROLL_SIGN_CACHE
    if _ROLL_SIGN_CACHE is None:
        def probe(x_ref, o_ref):
            o_ref[...] = pltpu.roll(x_ref[...], 1, 1)

        x = lax.broadcasted_iota(jnp.float32, (8, 128), 1)
        y = pl.pallas_call(
            probe,
            out_shape=jax.ShapeDtypeStruct((8, 128), jnp.float32),
            in_specs=[pl.BlockSpec(memory_space=pltpu.MemorySpace.VMEM)],
            out_specs=pl.BlockSpec(memory_space=pltpu.MemorySpace.VMEM),
        )(x)
        # jnp.roll(x, 1, axis=1)[0, 1] == x[0, 0] == 0
        _ROLL_SIGN_CACHE = 1 if float(y[0, 1]) == 0.0 else -1
    return _ROLL_SIGN_CACHE


# ----------------------------------------------------------------------------
# The fused GAN kernel (one grid step == b_step samples packed along lanes)
# ----------------------------------------------------------------------------
def _gan_kernel(x_ref,
                w_e1, w_e2, w_bt, w_d2u, w_d2e, w_d1u, w_d1e, w_out,
                w_c1, w_c2, w_c3,
                b_ref, head_ref,
                fake_ref, prob_ref):
    f32, bf16 = jnp.float32, jnp.bfloat16
    sign = _roll_sign()                # python int (cache primed before tracing)

    lanes = x_ref.shape[-1]            # b_step * 256
    nb = lanes // HW                   # samples packed along the lane axis

    # ---- hoisted pixel iotas and mask caches (built once per grid step) -----
    cc = lax.broadcasted_iota(jnp.int32, (1, lanes), 1)
    pix = cc & (HW - 1)                # pixel index inside each sample
    yy = pix >> W_SHIFT
    xx = pix & (W_IMG - 1)

    def roll_px(v, jnp_shift):
        # circular roll along the lane (pixel) axis, jnp.roll convention
        return pltpu.roll(v, (sign * jnp_shift) % lanes, 1)

    shift_masks = {}

    def shift_mask(dy, dx):
        if (dy, dx) not in shift_masks:
            ok = ((yy + dy >= 0) & (yy + dy < H_IMG) &
                  (xx + dx >= 0) & (xx + dx < W_IMG))
            shift_masks[(dy, dx)] = ok.astype(bf16)
        return shift_masks[(dy, dx)]

    par_x, par_y = {}, {}

    def even_x(level):
        if level not in par_x:
            par_x[level] = ((xx >> level) & 1) == 0
        return par_x[level]

    def even_y(level):
        if level not in par_y:
            par_y[level] = ((yy >> level) & 1) == 0
        return par_y[level]

    def shifted(v_bf, dy, dx):
        """v at pixel (y+dy, x+dx); zero outside the 16x16 image (bf16)."""
        s = dy * W_IMG + dx
        r = v_bf if s == 0 else roll_px(v_bf, -s)
        if dy == 0 and dx == 0:
            return r
        return r * shift_mask(dy, dx)

    def conv3x3(srcs, b_idx, cout, act, level):
        """Dilated 3x3 'same' conv; taps packed along K -> one dot per source.

        srcs: list of (bf16 activation (cin_pad, lanes), packed weight ref);
        multiple sources == split-K accumulation (replaces the skip concat).
        """
        d = 1 << level
        acc = None
        for v_bf, w_ref in srcs:
            slab = jnp.concatenate(
                [shifted(v_bf, dy * d, dx * d) for dy, dx in TAPS], axis=0)
            part = jnp.dot(w_ref[...], slab, preferred_element_type=f32)
            acc = part if acc is None else acc + part
        acc = acc + b_ref[:cout, b_idx:b_idx + 1]
        if act == "relu":
            acc = jnp.maximum(acc, 0.0)
        elif act == "lrelu":
            acc = jnp.where(acc > 0.0, acc, LRELU_SLOPE * acc)
        elif act == "tanh":
            acc = jnp.tanh(acc)
        return acc

    def maxpool(v, level):
        """2x2 max-pool of a level-`level` map; result replicated at level+1."""
        d = 1 << level
        v = jnp.maximum(v, jnp.where(even_x(level),
                                     roll_px(v, -d), roll_px(v, d)))
        v = jnp.maximum(v, jnp.where(even_y(level),
                                     roll_px(v, -d * W_IMG),
                                     roll_px(v, d * W_IMG)))
        return v

    def subsample(v, level):
        """Stride-2 subsample (even cells) of a level-`level` map."""
        d = 1 << level
        v = jnp.where(even_x(level), v, roll_px(v, d))
        v = jnp.where(even_y(level), v, roll_px(v, d * W_IMG))
        return v

    # input: (8, lanes) f32 -> pad to 16 channels, cast to bf16 once
    x = jnp.concatenate(
        [x_ref[0], jnp.zeros((CH_MIN - X_PAD, lanes), f32)], axis=0)
    x_bf = x.astype(bf16)

    # -------- Generator: U-Net (nearest upsample == identity in this rep) ----
    e1 = conv3x3([(x_bf, w_e1)], B_ENC1, C_E1, "relu", 0)               # 16x16
    e1_bf = e1.astype(bf16)
    e2 = conv3x3([(maxpool(e1_bf, 0), w_e2)], B_ENC2, C_E2, "relu", 1)  # 8x8
    e2_bf = e2.astype(bf16)
    bt = conv3x3([(maxpool(e2_bf, 1), w_bt)], B_BOTT, C_BT, "relu", 2)  # 4x4
    d2 = conv3x3([(bt.astype(bf16), w_d2u), (e2_bf, w_d2e)],
                 B_DEC2, C_D2, "relu", 1)                               # 8x8
    d1 = conv3x3([(d2.astype(bf16), w_d1u), (e1_bf, w_d1e)],
                 B_DEC1, C_D1, "relu", 0)                               # 16x16
    fake = conv3x3([(d1.astype(bf16), w_out)], B_OUT, C_OUT, "tanh", 0)
    fake_ref[0] = fake[:X_PAD, :]

    # -------- Discriminator: strided-conv encoder -----------------------------
    h = conv3x3([(fake.astype(bf16), w_c1)], B_C1, C_C1, "lrelu", 0)
    h = conv3x3([(subsample(h.astype(bf16), 0), w_c2)], B_C2, C_C2, "lrelu", 1)
    h = conv3x3([(subsample(h.astype(bf16), 1), w_c3)], B_C3, C_C3, "lrelu", 2)
    h = subsample(h, 2)                                     # 2x2 x64 (f32)

    # global average pool + FC + sigmoid (per sample along the lane axis)
    hv = jnp.sum(h * head_ref[:, 0:1], axis=0, keepdims=True)   # (1, lanes)
    lane128 = lax.broadcasted_iota(jnp.int32, (1, 128), 1)
    z = jnp.zeros((1, 128), f32)
    for b in range(nb):
        seg = jnp.sum(hv[:, b * HW:(b + 1) * HW], axis=1, keepdims=True)
        z = z + jnp.where(lane128 == b, seg, 0.0)
    z = z * (1.0 / HW) + head_ref[0:1, 1:2]
    prob = 1.0 / (1.0 + jnp.exp(-z))                        # exact sigmoid
    prob_ref[0] = jnp.broadcast_to(prob, (8, 128))


# ----------------------------------------------------------------------------
# Parameter init (deterministic, synthetic) - same format as before
# ----------------------------------------------------------------------------
def _conv_params(key, cin, cout, k=3):
    fan_in = k * k * cin
    w = jax.random.normal(key, (k * k * cin, cout), jnp.float32) * (2.0 / fan_in) ** 0.5
    b = jnp.zeros((cout,), jnp.float32)
    return {"w": w, "b": b}


def init_gan_params(key, cin):
    ks = jax.random.split(key, 10)
    params_g = {
        "enc1": _conv_params(ks[0], cin, 16),
        "enc2": _conv_params(ks[1], 16, 32),
        "bott": _conv_params(ks[2], 32, 32),
        "dec2": _conv_params(ks[3], 32 + 32, 16),
        "dec1": _conv_params(ks[4], 16 + 16, 16),
        "out":  _conv_params(ks[5], 16, cin),
    }
    params_d = {
        "c1": _conv_params(ks[6], cin, 16),
        "c2": _conv_params(ks[7], 16, 32),
        "c3": _conv_params(ks[8], 32, 64),
        "fc_w": jax.random.normal(ks[9], (64, 1), jnp.float32) * (1.0 / 64.0) ** 0.5,
        "fc_b": jnp.zeros((1,), jnp.float32),
    }
    return params_g, params_d


# ----------------------------------------------------------------------------
# Host-side weight packing for the kernel layout
# ----------------------------------------------------------------------------
def _taps(w_mat):
    """(9*cin, cout) -> (9, cin, cout), tap-major (matches im2col ordering)."""
    cin = w_mat.shape[0] // 9
    return w_mat.reshape(9, cin, w_mat.shape[1])


def _pack_w(w_mat, cin_pad, cout_pad):
    """(9*cin, cout) f32 -> (cout_pad, 9*cin_pad) bf16, taps packed along K."""
    w = jnp.transpose(_taps(w_mat), (0, 2, 1))               # (9, cout, cin)
    _, cout, cin = w.shape
    w = jnp.pad(w, ((0, 0), (0, cout_pad - cout), (0, cin_pad - cin)))
    return (jnp.transpose(w, (1, 0, 2))
            .reshape(cout_pad, 9 * cin_pad).astype(jnp.bfloat16))


def _pad_bias(b):
    return jnp.pad(b.astype(jnp.float32), (0, B_ROWS - b.shape[0]))


def _split_w(w_mat, c_first):
    """Split a conv-over-concat weight into its (first, second) input halves."""
    t = _taps(w_mat)                                         # (9, c1+c2, cout)
    cout = t.shape[2]
    u = t[:, :c_first, :].reshape(9 * c_first, cout)
    e = t[:, c_first:, :].reshape(-1, cout)
    return u, e


# ----------------------------------------------------------------------------
# Public entry point: GAN.forward  (fake = G(x); return D(fake), fake)
# ----------------------------------------------------------------------------
@functools.partial(jax.jit, static_argnums=(3,))
def _gan_forward_impl(params_g, params_d, x_nchw, b_step):
    n, c, h, w = x_nchw.shape
    assert h == H_IMG and w == W_IMG and c <= X_PAD and n % b_step == 0
    g, d = params_g, params_d
    n_steps = n // b_step
    lanes = b_step * HW

    # ---- pack weights (per-layer channel padding, taps stacked along K) -----
    c_u2 = g["bott"]["w"].shape[1]       # channels of the upsampled bottleneck
    c_u1 = g["dec2"]["w"].shape[1]       # channels of the upsampled d2
    w_d2u_m, w_d2e_m = _split_w(g["dec2"]["w"], c_u2)
    w_d1u_m, w_d1e_m = _split_w(g["dec1"]["w"], c_u1)
    w_list = [
        _pack_w(g["enc1"]["w"], CH_MIN, C_E1),
        _pack_w(g["enc2"]["w"], C_E1, C_E2),
        _pack_w(g["bott"]["w"], C_E2, C_BT),
        _pack_w(w_d2u_m, C_BT, C_D2),
        _pack_w(w_d2e_m, C_E2, C_D2),
        _pack_w(w_d1u_m, C_D2, C_D1),
        _pack_w(w_d1e_m, C_E1, C_D1),
        _pack_w(g["out"]["w"], C_D1, C_OUT),
        _pack_w(d["c1"]["w"], C_OUT, C_C1),
        _pack_w(d["c2"]["w"], C_C1, C_C2),
        _pack_w(d["c3"]["w"], C_C2, C_C3),
    ]

    # ---- bias stack (B_ROWS x NUM_B) and FC head -----------------------------
    b_stack = jnp.stack([
        _pad_bias(g["enc1"]["b"]), _pad_bias(g["enc2"]["b"]),
        _pad_bias(g["bott"]["b"]), _pad_bias(g["dec2"]["b"]),
        _pad_bias(g["dec1"]["b"]), _pad_bias(g["out"]["b"]),
        _pad_bias(d["c1"]["b"]), _pad_bias(d["c2"]["b"]), _pad_bias(d["c3"]["b"]),
    ], axis=1)                                               # (64, 9) f32

    fc_col = jnp.pad(d["fc_w"][:, 0].astype(jnp.float32),
                     (0, B_ROWS - d["fc_w"].shape[0]))
    b_col = jnp.zeros((B_ROWS,), jnp.float32).at[0].set(d["fc_b"][0])
    head = jnp.stack([fc_col, b_col], axis=1)                # (64, 2) f32

    # ---- pack x: channels (pad->8) on sublanes, b_step samples along lanes --
    x_cm = jnp.pad(x_nchw.reshape(n, c, HW).astype(jnp.float32),
                   ((0, 0), (0, X_PAD - c), (0, 0)))         # (n, 8, 256)
    x_packed = jnp.transpose(x_cm.reshape(n_steps, b_step, X_PAD, HW),
                             (0, 2, 1, 3)).reshape(n_steps, X_PAD, lanes)

    mxu_k = sum(int(wi.shape[0]) * int(wi.shape[1]) for wi in w_list)
    cost = pl.CostEstimate(
        flops=2 * n_steps * mxu_k * lanes,
        transcendentals=n_steps * (C_OUT * lanes + 128),
        bytes_accessed=int(x_packed.size * 4
                           + sum(int(wi.size) * 2 for wi in w_list)
                           + b_stack.size * 4 + head.size * 4
                           + n_steps * (X_PAD * lanes + 8 * 128) * 4),
    )

    grid_spec = pltpu.PrefetchScalarGridSpec(
        num_scalar_prefetch=0,
        grid=(n_steps,),
        in_specs=([pl.BlockSpec((1, X_PAD, lanes), lambda i: (i, 0, 0))]        # x
                  + [pl.BlockSpec(wi.shape, lambda i: (0, 0)) for wi in w_list]  # weights
                  + [pl.BlockSpec(b_stack.shape, lambda i: (0, 0)),              # biases
                     pl.BlockSpec(head.shape, lambda i: (0, 0))]),               # fc head
        out_specs=[
            pl.BlockSpec((1, X_PAD, lanes), lambda i: (i, 0, 0)),                # fake
            pl.BlockSpec((1, 8, 128), lambda i: (i, 0, 0)),                      # prob
        ],
    )

    fake_p, prob_p = pl.pallas_call(
        _gan_kernel,
        out_shape=(jax.ShapeDtypeStruct((n_steps, X_PAD, lanes), jnp.float32),
                   jax.ShapeDtypeStruct((n_steps, 8, 128), jnp.float32)),
        grid_spec=grid_spec,
        compiler_params=pltpu.CompilerParams(
            dimension_semantics=("parallel",),
            vmem_limit_bytes=32 * 1024 * 1024,
        ),
        cost_estimate=cost,
    )(x_packed, *w_list, b_stack, head)

    # ---- unpack --------------------------------------------------------------
    fake = jnp.transpose(fake_p.reshape(n_steps, X_PAD, b_step, HW),
                         (0, 2, 1, 3)).reshape(n, X_PAD, HW)
    fake = fake[:, :c, :].reshape(n, c, H_IMG, W_IMG)
    out = prob_p[:, 0, :b_step].reshape(n, 1)
    return out, fake


def gan_forward(params_g, params_d, x_nchw):
    _roll_sign()       # prime the roll-convention probe before tracing the kernel
    n = x_nchw.shape[0]
    b_step = next(b for b in (MAX_BATCH_PER_STEP, 4, 2, 1) if n % b == 0)
    return _gan_forward_impl(params_g, params_d, x_nchw, b_step)


# ----------------------------------------------------------------------------
# Pure-JAX reference of the same stand-in network (for the in-script check)
# ----------------------------------------------------------------------------
def _conv2d_ref(x, w_mat, b, *, stride=1, act="relu"):
    n, h, w, c = x.shape
    xp = jnp.pad(x, ((0, 0), (1, 1), (1, 1), (0, 0)))
    ho = (h + 2 - 3) // stride + 1
    wo = (w + 2 - 3) // stride + 1
    cols = []
    for ih in range(3):
        for iw in range(3):
            cols.append(xp[:, ih:ih + stride * ho:stride,
                           iw:iw + stride * wo:stride, :])
    patches = jnp.concatenate(cols, axis=-1).reshape(n * ho * wo, 9 * c)
    out = jnp.dot(patches.astype(jnp.bfloat16), w_mat.astype(jnp.bfloat16),
                  preferred_element_type=jnp.float32) + b
    if act == "relu":
        out = jnp.maximum(out, 0.0)
    elif act == "lrelu":
        out = jnp.where(out > 0.0, out, LRELU_SLOPE * out)
    elif act == "tanh":
        out = jnp.tanh(out)
    return out.reshape(n, ho, wo, w_mat.shape[1])


def _maxpool_ref(x):
    return jnp.maximum(jnp.maximum(x[:, 0::2, 0::2, :], x[:, 1::2, 0::2, :]),
                       jnp.maximum(x[:, 0::2, 1::2, :], x[:, 1::2, 1::2, :]))


def _upsample_ref(x):
    return jnp.repeat(jnp.repeat(x, 2, axis=1), 2, axis=2)


def _unet_ref(p, x):
    e1 = _conv2d_ref(x, p["enc1"]["w"], p["enc1"]["b"])
    p1 = _maxpool_ref(e1)
    e2 = _conv2d_ref(p1, p["enc2"]["w"], p["enc2"]["b"])
    p2 = _maxpool_ref(e2)
    bt = _conv2d_ref(p2, p["bott"]["w"], p["bott"]["b"])
    d2 = _conv2d_ref(jnp.concatenate([_upsample_ref(bt), e2], axis=-1),
                     p["dec2"]["w"], p["dec2"]["b"])
    d1 = _conv2d_ref(jnp.concatenate([_upsample_ref(d2), e1], axis=-1),
                     p["dec1"]["w"], p["dec1"]["b"])
    return _conv2d_ref(d1, p["out"]["w"], p["out"]["b"], act="tanh")


def _encoder_ref(p, x):
    h = _conv2d_ref(x, p["c1"]["w"], p["c1"]["b"], stride=2, act="lrelu")
    h = _conv2d_ref(h, p["c2"]["w"], p["c2"]["b"], stride=2, act="lrelu")
    h = _conv2d_ref(h, p["c3"]["w"], p["c3"]["b"], stride=2, act="lrelu")
    pooled = jnp.mean(h, axis=(1, 2))
    z = pooled @ p["fc_w"] + p["fc_b"]
    return 1.0 / (1.0 + jnp.exp(-z))


def _gan_reference(params_g, params_d, x_nchw):
    x = jnp.transpose(x_nchw, (0, 2, 3, 1))
    fake = _unet_ref(params_g, x)
    out = _encoder_ref(params_d, fake)
    return out, jnp.transpose(fake, (0, 3, 1, 2))


# ----------------------------------------------------------------------------
if __name__ == "__main__":
    N, C, H, W = 2, 4, 16, 16
    key = jax.random.PRNGKey(0)
    x = jax.random.normal(key, (N, C, H, W), jnp.float32)
    params_g, params_d = init_gan_params(jax.random.PRNGKey(42), C)

    out, fake = gan_forward(params_g, params_d, x)
    jax.block_until_ready(out)
    jax.block_until_ready(fake)

    assert out.shape == (N, 1)
    assert fake.shape == (N, C, H, W)

    # numerical check against the plain-JAX reference of the same network
    out_r, fake_r = jax.jit(_gan_reference)(params_g, params_d, x)
    np.testing.assert_allclose(np.asarray(out), np.asarray(out_r), atol=5e-2, rtol=0)
    np.testing.assert_allclose(np.asarray(fake), np.asarray(fake_r), atol=5e-2, rtol=0)

    print("KERNEL_OK")
</pallas_src>

<mosaic_0001>
module attributes {stable_mosaic.version = 11 : i64} {
  func.func @probe(%arg0: memref<8x128xf32, #tpu.memory_space<vmem>>, %arg1: memref<8x128xf32, #tpu.memory_space<vmem>>) attributes {dimension_semantics = [], scalar_prefetch = 0 : i64, scratch_operands = 0 : i64, tpu.core_type = #tpu.core_type<tc>} {
    %c0 = arith.constant 0 : index
    %c0_0 = arith.constant 0 : index
    %0 = vector.load %arg0[%c0, %c0_0] : memref<8x128xf32, #tpu.memory_space<vmem>>, vector<8x128xf32>
    %c1_i32 = arith.constant 1 : i32
    %1 = tpu.dynamic_rotate %0 by %c1_i32 dim 1 : vector<8x128xf32>, i32 -> vector<8x128xf32>
    %c0_1 = arith.constant 0 : index
    %c0_2 = arith.constant 0 : index
    %2 = vector.load %arg1[%c0_1, %c0_2] : memref<8x128xf32, #tpu.memory_space<vmem>>, vector<8x128xf32>
    tpu.vector_store %arg1[%c0_1, %c0_2], %1 {strides = array<i32>} : memref<8x128xf32, #tpu.memory_space<vmem>>, vector<8x128xf32>,
    return
  }
}

</mosaic_0001>

<llo_original>
// kernel: tpu_custom_call.1
$region0: #{tpu_custom_call.1}
  #allocation0 [shape = 'u32[]', space=smem, size = 0x4, offset = 0x4, fixed_abs, tag = 'smem constant byte address 0x4 - core index']
  #allocation1 [shape = 'u32[144,128]{1,0:T(1,128)}', space=vmem, size = 0x12000, scoped, tag = 'internal scratch']
  %s0 = inlined_call_operand.hbm [shape: f32[8,128], index: 0, kind: input, shape index: {}]
  %s1 = inlined_call_operand.hbm [shape: f32[8,128], index: 1, kind: output, shape index: {}]
  %s2 = sld [smem:[#allocation0]]
  $region18: #{tpu_custom_call.1} parent=0
    _
  %s4 = ssub.s32 1, %s2
  %s5 = scalar_select 0, %s4, %s2
  $region1: #{tpu_custom_call.1} parent=0
    #allocation2 [shape = 'u8[4096]{0}', space=vmem, size = 0x1000, scoped, tag = 'input window, operand 0, single buffered']
    #allocation3 [shape = 's32[1]{0}', space=sflag, size = 0x4, scoped, tag = 'scoped memory for tpu_custom_call.1']
    #allocation4 [shape = 's32[1]{0}', space=sflag, size = 0x4, scoped, tag = 'scoped memory for tpu_custom_call.1']
    #allocation5 [shape = 'u8[4096]{0}', space=vmem, size = 0x1000, scoped, tag = 'output window, operand 0, single buffered']
    %6 = vsyncpa [#allocation3], 0
    %7 = vsyncpa [#allocation4], 0
    // Predicated region
    $region2: #{tpu_custom_call.1} parent=1 // pred_check
      _
    $region3: #{tpu_custom_call.1} parent=1 // pred_check_branch
      %9 = sbr.rel (0) target = $region5
    $region4: #{tpu_custom_call.1} parent=1 // pred_region
      %s11 = ssub.s32 128, 128
      %12 = vsyncadd [#allocation3], %s11
      %s14 = sshll.u32 [#allocation2], 4
      %s15 = int_to_ptr.vmem [resolvable:$true] %s14
      %17 = dma.hbm_to_vmem [thread:$0]  %s0, 128, %s15, [#allocation3]
    $region5: #{tpu_custom_call.1} parent=1 // pred_fallthru
      _
    // Predicated region
    $region6: #{tpu_custom_call.1} parent=1 // pred_check
      _
    $region7: #{tpu_custom_call.1} parent=1 // pred_check_branch
      %19 = sbr.rel (0) target = $region9
    $region8: #{tpu_custom_call.1} parent=1 // pred_region
      %20 = dma.done [#allocation3], 128
    $region9: #{tpu_custom_call.1} parent=1 // pred_fallthru
      _
    %v21 = vld [vmem:[#allocation2] sm:$0xff]
    %22 = vrot.lane.b32.xlu0 %v21, 1
    %v23 = vpop.permute.xlu0 %22
    %24 = vst [vmem:[#allocation5] sm:$0xff] %v23
    // Predicated region
    $region10: #{tpu_custom_call.1} parent=1 // pred_check
      _
    $region11: #{tpu_custom_call.1} parent=1 // pred_check_branch
      %26 = sbr.rel (0) target = $region13
    $region12: #{tpu_custom_call.1} parent=1 // pred_region
      %s28 = ssub.s32 128, 128
      %29 = vsyncadd [#allocation4], %s28
      %s31 = sshll.u32 [#allocation5], 4
      %s32 = int_to_ptr.vmem [resolvable:$true] %s31
      %34 = dma.vmem_to_hbm [thread:$0]  %s32, 128, %s1, [#allocation4]
    $region13: #{tpu_custom_call.1} parent=1 // pred_fallthru
      _
    // Predicated region
    $region14: #{tpu_custom_call.1} parent=1 // pred_check
      _
    $region15: #{tpu_custom_call.1} parent=1 // pred_check_branch
      %36 = sbr.rel (0) target = $region17
    $region16: #{tpu_custom_call.1} parent=1 // pred_region
      %37 = dma.done [#allocation4], 128
    $region17: #{tpu_custom_call.1} parent=1 // pred_fallthru
      _
    %38 = vsyncpa [#allocation3], 1
    %39 = vsyncpa [#allocation4], 1

</llo_original>
